<compile_context>
chip_gen: v7x
topology: tpu7x:2x2x1
jax: 0.10.0
libtpu: 0.0.40
codegen_flags: <defaults>
</compile_context>

<pallas_src>
import jax
import jax.numpy as jnp
from jax import lax
from jax.experimental import pallas as pl
from jax.experimental.pallas import tpu as pltpu


def _round_up(x: int, m: int) -> int:
    return (x + m - 1) // m * m


def mlp_kernel(x_ref, w1_ref, b1_ref, w2_ref, b2_ref, o_ref):
    # x_ref:  (TB, in_dim)
    # w1_ref: (hid_p, in_dim)     b1_ref: (1, hid_p)
    # w2_ref: (out_p, hid_p)      b2_ref: (1, out_p)
    # o_ref:  (TB, out_p)
    x = x_ref[...]

    # x @ w1.T (PyTorch Linear layout) -> (TB, hid_p), f32 accumulation on MXU.
    # Contracting on dim 1 of the RHS is handled natively by the MXU; if the
    # bundle dump ever shows a per-step vxpose here, hoist a one-off weight
    # transpose into the wrapper instead.
    h1 = lax.dot_general(
        x, w1_ref[...],
        dimension_numbers=(((1,), (1,)), ((), ())),
        preferred_element_type=jnp.float32,
    ) + b1_ref[...]

    # Sigmoid in f32 (EUP; f32 keeps the elementwise path portable to v5e).
    h2 = jax.nn.sigmoid(h1)

    # (TB, hid_p) x (out_p, hid_p) contracted on hid -> (TB, out_p).
    y = lax.dot_general(
        h2, w2_ref[...],
        dimension_numbers=(((1,), (1,)), ((), ())),
        preferred_element_type=jnp.float32,
    ) + b2_ref[...]

    o_ref[...] = y.astype(o_ref.dtype)


def _pick_batch_tile(B, in_dim, hid_p, out_p, itemsize=4):
    """VMEM-budgeted batch tile.

    Per-row tile bytes: x and out blocks are double-buffered by the pipeline,
    h1/h2 temporaries are single-buffered; resident weights/biases are
    subtracted from the budget up front.
    """
    row_bytes = itemsize * (2 * in_dim + 2 * out_p + 2 * hid_p)
    weight_bytes = 2 * itemsize * (hid_p * in_dim + hid_p + out_p * hid_p + out_p)
    tile_budget = (24 << 20) - weight_bytes          # headroom under 32 MiB scoped VMEM
    tb_cap = max(256, min(16384, (tile_budget // row_bytes) // 256 * 256))

    if B <= 256:
        # Single step; per-step overhead (~0.35 us) dominates at these sizes
        # and TB == B satisfies the "block equals full dim" layout rule.
        return B
    # Ensure >= 2 grid steps so v7x's two TensorCores both get work; 256-row
    # granularity keeps the sublane (8) alignment and lane-dense DMAs.
    return min(tb_cap, _round_up(pl.cdiv(B, 2), 256))


def nn_network_forward(x, w1, b1, w2, b2, *, pad_output_lanes=False):
    """Forward pass of NN_Network (sigmoid MLP).

    x:  (B, in_dim)
    w1: (hid, in_dim)    b1: (hid,)      -- PyTorch nn.Linear layout, NOT transposed
    w2: (out_dim, hid)   b2: (out_dim,)
    """
    B, in_dim = x.shape
    hid = w1.shape[0]
    out_dim = w2.shape[0]

    # ---- internal lane padding (exact; see header comment) -------------------
    hid_p = _round_up(hid, 128)
    out_p = _round_up(out_dim, 128) if pad_output_lanes else out_dim
    if hid_p != hid:
        w1 = jnp.pad(w1, ((0, hid_p - hid), (0, 0)))
        b1 = jnp.pad(b1, (0, hid_p - hid))
        w2 = jnp.pad(w2, ((0, 0), (0, hid_p - hid)))
    if out_p != out_dim:
        w2 = jnp.pad(w2, ((0, out_p - out_dim), (0, 0)))
        b2 = jnp.pad(b2, (0, out_p - out_dim))

    # Biases as (1, n) rows for lane-aligned broadcast (reshape only).
    b1_r = jnp.reshape(b1, (1, hid_p))
    b2_r = jnp.reshape(b2, (1, out_p))

    # ---- batch-only tiling; weights/biases stay VMEM-resident ----------------
    TB = _pick_batch_tile(B, in_dim, hid_p, out_p, itemsize=x.dtype.itemsize)
    grid = (pl.cdiv(B, TB),)

    out = pl.pallas_call(
        mlp_kernel,
        out_shape=jax.ShapeDtypeStruct((B, out_p), x.dtype),
        grid_spec=pl.GridSpec(
            grid=grid,
            in_specs=[
                pl.BlockSpec((TB, in_dim), lambda i: (i, 0)),      # x: tiled on batch
                pl.BlockSpec((hid_p, in_dim), lambda i: (0, 0)),   # w1: resident
                pl.BlockSpec((1, hid_p), lambda i: (0, 0)),        # b1: resident
                pl.BlockSpec((out_p, hid_p), lambda i: (0, 0)),    # w2: resident
                pl.BlockSpec((1, out_p), lambda i: (0, 0)),        # b2: resident
            ],
            out_specs=pl.BlockSpec((TB, out_p), lambda i: (i, 0)),
        ),
        compiler_params=pltpu.CompilerParams(
            # Batch steps are independent -> parallel (v7x shards across 2 TCs).
            dimension_semantics=("parallel",),
            # Explicit scoped-VMEM limit: raises v5e's 16 MiB default, matches
            # v6e/v7x defaults, stays within v7x's 64 MiB physical VMEM.
            vmem_limit_bytes=32 * 1024 * 1024,
        ),
    )(x, w1, b1_r, w2, b2_r)

    if out_p != out_dim:
        out = out[:, :out_dim]
    return out


if __name__ == "__main__":
    # Shapes consistent with NN_Network(in_dim, hid, out_dim)
    batch, in_dim, hid, out_dim = 8, 32, 32, 16

    key = jax.random.PRNGKey(0)
    k_x, k_w1, k_b1, k_w2, k_b2 = jax.random.split(key, 5)

    # Deterministic parameter init (PyTorch nn.Linear-style uniform bounds).
    bound1 = 1.0 / (in_dim ** 0.5)
    bound2 = 1.0 / (hid ** 0.5)
    x = jax.random.normal(k_x, (batch, in_dim), dtype=jnp.float32)
    w1 = jax.random.uniform(k_w1, (hid, in_dim), jnp.float32, -bound1, bound1)
    b1 = jax.random.uniform(k_b1, (hid,), jnp.float32, -bound1, bound1)
    w2 = jax.random.uniform(k_w2, (out_dim, hid), jnp.float32, -bound2, bound2)
    b2 = jax.random.uniform(k_b2, (out_dim,), jnp.float32, -bound2, bound2)

    y = nn_network_forward(x, w1, b1, w2, b2)
    jax.block_until_ready(y)

    # Pure-JAX reference check (PyTorch semantics: x @ W.T + b).
    ref = jax.nn.sigmoid(x @ w1.T + b1) @ w2.T + b2
    assert y.shape == (batch, out_dim)
    assert jnp.allclose(y, ref, atol=1e-5, rtol=1e-5)

    # Also exercise the lane-padded-output path once for coverage.
    y_pad = nn_network_forward(x, w1, b1, w2, b2, pad_output_lanes=True)
    jax.block_until_ready(y_pad)
    assert y_pad.shape == (batch, out_dim)
    assert jnp.allclose(y_pad, ref, atol=1e-5, rtol=1e-5)

    print("KERNEL_OK")
</pallas_src>

<mosaic_0001>
module attributes {stable_mosaic.version = 11 : i64} {
  func.func @mlp_kernel(%arg0: i32, %arg1: memref<8x32xf32, #tpu.memory_space<vmem>>, %arg2: memref<128x32xf32, #tpu.memory_space<vmem>>, %arg3: memref<1x128xf32, #tpu.memory_space<vmem>>, %arg4: memref<16x128xf32, #tpu.memory_space<vmem>>, %arg5: memref<1x16xf32, #tpu.memory_space<vmem>>, %arg6: memref<8x16xf32, #tpu.memory_space<vmem>>) attributes {dimension_semantics = [#tpu.dimension_semantics<parallel>], iteration_bounds = array<i64: 1>, scalar_prefetch = 0 : i64, scratch_operands = 0 : i64, tpu.core_type = #tpu.core_type<tc>, window_params = [{transform_indices = @transform_0, window_bounds = array<i64: 8, 32>}, {pipeline_mode = #tpu.pipeline_mode<synchronous>, transform_indices = @transform_1, window_bounds = array<i64: 128, 32>}, {pipeline_mode = #tpu.pipeline_mode<synchronous>, transform_indices = @transform_2, window_bounds = array<i64: 1, 128>}, {pipeline_mode = #tpu.pipeline_mode<synchronous>, transform_indices = @transform_3, window_bounds = array<i64: 16, 128>}, {pipeline_mode = #tpu.pipeline_mode<synchronous>, transform_indices = @transform_4, window_bounds = array<i64: 1, 16>}, {transform_indices = @transform_5, window_bounds = array<i64: 8, 16>}]} {
    %c0 = arith.constant 0 : index
    %c0_0 = arith.constant 0 : index
    %0 = vector.load %arg1[%c0, %c0_0] : memref<8x32xf32, #tpu.memory_space<vmem>>, vector<8x32xf32>
    %c0_1 = arith.constant 0 : index
    %c0_2 = arith.constant 0 : index
    %1 = vector.load %arg2[%c0_1, %c0_2] : memref<128x32xf32, #tpu.memory_space<vmem>>, vector<128x32xf32>
    %cst = arith.constant dense<0.000000e+00> : vector<8x128xf32>
    %2 = tpu.matmul %0, %1, %cst {dimension_numbers = #tpu.dot_dimension_numbers<[1], [1], [0], [0], [0, 0, 1, 0], [], []>} : vector<8x32xf32>, vector<128x32xf32>, vector<8x128xf32> -> vector<8x128xf32>
    %c0_3 = arith.constant 0 : index
    %c0_4 = arith.constant 0 : index
    %3 = vector.load %arg3[%c0_3, %c0_4] : memref<1x128xf32, #tpu.memory_space<vmem>>, vector<1x128xf32>
    %4 = vector.broadcast %3 : vector<1x128xf32> to vector<8x128xf32>
    %5 = arith.addf %2, %4 : vector<8x128xf32>
    %6 = arith.negf %5 : vector<8x128xf32>
    %7 = math.exp %6 : vector<8x128xf32>
    %cst_5 = arith.constant 1.000000e+00 : f32
    %8 = vector.broadcast %cst_5 : f32 to vector<8x128xf32>
    %9 = arith.addf %8, %7 : vector<8x128xf32>
    %10 = arith.divf %8, %9 : vector<8x128xf32>
    %c0_6 = arith.constant 0 : index
    %c0_7 = arith.constant 0 : index
    %11 = vector.load %arg4[%c0_6, %c0_7] : memref<16x128xf32, #tpu.memory_space<vmem>>, vector<16x128xf32>
    %cst_8 = arith.constant dense<0.000000e+00> : vector<8x16xf32>
    %12 = tpu.matmul %10, %11, %cst_8 {dimension_numbers = #tpu.dot_dimension_numbers<[1], [1], [0], [0], [0, 0, 1, 0], [], []>} : vector<8x128xf32>, vector<16x128xf32>, vector<8x16xf32> -> vector<8x16xf32>
    %c0_9 = arith.constant 0 : index
    %c0_10 = arith.constant 0 : index
    %13 = vector.load %arg5[%c0_9, %c0_10] : memref<1x16xf32, #tpu.memory_space<vmem>>, vector<1x16xf32>
    %14 = vector.broadcast %13 : vector<1x16xf32> to vector<8x16xf32>
    %15 = arith.addf %12, %14 : vector<8x16xf32>
    %c0_11 = arith.constant 0 : index
    %c0_12 = arith.constant 0 : index
    %16 = vector.load %arg6[%c0_11, %c0_12] : memref<8x16xf32, #tpu.memory_space<vmem>>, vector<8x16xf32>
    tpu.vector_store %arg6[%c0_11, %c0_12], %15 {strides = array<i32>} : memref<8x16xf32, #tpu.memory_space<vmem>>, vector<8x16xf32>,
    return
  }
  func.func @transform_0(%arg0: i32) -> (i32, i32) {
    %c0_i32 = arith.constant 0 : i32
    %c0_i32_0 = arith.constant 0 : i32
    return %arg0, %c0_i32 : i32, i32
  }
  func.func @transform_1(%arg0: i32) -> (i32, i32) {
    %c0_i32 = arith.constant 0 : i32
    %c0_i32_0 = arith.constant 0 : i32
    %c0_i32_1 = arith.constant 0 : i32
    return %c0_i32, %c0_i32_0 : i32, i32
  }
  func.func @transform_2(%arg0: i32) -> (i32, i32) {
    %c0_i32 = arith.constant 0 : i32
    %c0_i32_0 = arith.constant 0 : i32
    %c0_i32_1 = arith.constant 0 : i32
    return %c0_i32, %c0_i32_0 : i32, i32
  }
  func.func @transform_3(%arg0: i32) -> (i32, i32) {
    %c0_i32 = arith.constant 0 : i32
    %c0_i32_0 = arith.constant 0 : i32
    %c0_i32_1 = arith.constant 0 : i32
    return %c0_i32, %c0_i32_0 : i32, i32
  }
  func.func @transform_4(%arg0: i32) -> (i32, i32) {
    %c0_i32 = arith.constant 0 : i32
    %c0_i32_0 = arith.constant 0 : i32
    %c0_i32_1 = arith.constant 0 : i32
    return %c0_i32, %c0_i32_0 : i32, i32
  }
  func.func @transform_5(%arg0: i32) -> (i32, i32) {
    %c0_i32 = arith.constant 0 : i32
    %c0_i32_0 = arith.constant 0 : i32
    return %arg0, %c0_i32 : i32, i32
  }
}

</mosaic_0001>

<llo_original>
// kernel: tpu_custom_call.1
$region0: #{tpu_custom_call.1}
  #allocation0 [shape = 'u32[]', space=smem, size = 0x4, offset = 0x4, fixed_abs, tag = 'smem constant byte address 0x4 - core index']
  #allocation1 [shape = 'u32[144,128]{1,0:T(1,128)}', space=vmem, size = 0x12000, scoped, tag = 'internal scratch']
  %s0 = inlined_call_operand.vmem [shape: f32[8,32], index: 0, kind: input, shape index: {}]
  %s1 = inlined_call_operand.vmem [shape: f32[128,32], index: 1, kind: input, shape index: {}]
  %s2 = inlined_call_operand.vmem [shape: f32[1,128], index: 2, kind: input, shape index: {}]
  %s3 = inlined_call_operand.vmem [shape: f32[16,128], index: 3, kind: input, shape index: {}]
  %s4 = inlined_call_operand.vmem [shape: f32[1,16], index: 4, kind: input, shape index: {}]
  %s5 = inlined_call_operand.hbm [shape: f32[8,16], index: 5, kind: output, shape index: {}]
  %s6 = sld [smem:[#allocation0]]
  $region30: #{tpu_custom_call.1} parent=0
    _
  %s8 = ssub.s32 1, %s6
  %s9 = scalar_select 0, %s8, %s6
  $region1: #{tpu_custom_call.1} parent=0
    #allocation2 [shape = 'u8[4096]{0}', space=vmem, size = 0x1000, scoped, tag = 'output window, operand 0, single buffered']
    #allocation3 [shape = 's32[1]{0}', space=sflag, size = 0x4, scoped, tag = 'scoped memory for tpu_custom_call.1']
    %10 = vsyncpa [#allocation3], 0
    // Predicated region
    $region2: #{tpu_custom_call.1} parent=1 // pred_check
      _
    $region3: #{tpu_custom_call.1} parent=1 // pred_check_branch
      %12 = sbr.rel (0) target = $region5
    $region4: #{tpu_custom_call.1} parent=1 // pred_region
      _
    $region5: #{tpu_custom_call.1} parent=1 // pred_fallthru
      _
    // Predicated region
    $region6: #{tpu_custom_call.1} parent=1 // pred_check
      _
    $region7: #{tpu_custom_call.1} parent=1 // pred_check_branch
      %14 = sbr.rel (0) target = $region9
    $region8: #{tpu_custom_call.1} parent=1 // pred_region
      _
    $region9: #{tpu_custom_call.1} parent=1 // pred_fallthru
      _
    // Predicated region
    $region10: #{tpu_custom_call.1} parent=1 // pred_check
      _
    $region11: #{tpu_custom_call.1} parent=1 // pred_check_branch
      %16 = sbr.rel (0) target = $region13
    $region12: #{tpu_custom_call.1} parent=1 // pred_region
      _
    $region13: #{tpu_custom_call.1} parent=1 // pred_fallthru
      _
    // Predicated region
    $region14: #{tpu_custom_call.1} parent=1 // pred_check
      _
    $region15: #{tpu_custom_call.1} parent=1 // pred_check_branch
      %18 = sbr.rel (0) target = $region17
    $region16: #{tpu_custom_call.1} parent=1 // pred_region
      _
    $region17: #{tpu_custom_call.1} parent=1 // pred_fallthru
      _
    // Predicated region
    $region18: #{tpu_custom_call.1} parent=1 // pred_check
      _
    $region19: #{tpu_custom_call.1} parent=1 // pred_check_branch
      %20 = sbr.rel (0) target = $region21
    $region20: #{tpu_custom_call.1} parent=1 // pred_region
      _
    $region21: #{tpu_custom_call.1} parent=1 // pred_fallthru
      _
    %v21 = vld [vmem:[%s0] sm:$0xff]
    %v22 = vld [vmem:[%s1] sm:$0xff]
    %v23 = vld [vmem:[%s1 + $0x8] sm:$0xff]
    %v24 = vld [vmem:[%s1 + $0x10] sm:$0xff]
    %v25 = vld [vmem:[%s1 + $0x18] sm:$0xff]
    %v26 = vld [vmem:[%s1 + $0x20] sm:$0xff]
    %v27 = vld [vmem:[%s1 + $0x28] sm:$0xff]
    %v28 = vld [vmem:[%s1 + $0x30] sm:$0xff]
    %v29 = vld [vmem:[%s1 + $0x38] sm:$0xff]
    %v30 = vld [vmem:[%s1 + $0x40] sm:$0xff]
    %v31 = vld [vmem:[%s1 + $0x48] sm:$0xff]
    %v32 = vld [vmem:[%s1 + $0x50] sm:$0xff]
    %v33 = vld [vmem:[%s1 + $0x58] sm:$0xff]
    %v34 = vld [vmem:[%s1 + $0x60] sm:$0xff]
    %v35 = vld [vmem:[%s1 + $0x68] sm:$0xff]
    %v36 = vld [vmem:[%s1 + $0x70] sm:$0xff]
    %v37 = vld [vmem:[%s1 + $0x78] sm:$0xff]
    %v38 = vld [vmem:[%s2] sm:$0x1]
    %v40 = vlaneseq
    %v41 = vshrl.u32 %v40, 7
    %v42 = vsub.s32 0, %v41
    %v43 = vrot.slane %v38, %v42
    %vm45 = vcmask 261120
    %v47 = vsel %vm45, %v21, 0
    %v50 = vsel %vm45, %v22, 0
    %v53 = vsel %vm45, %v23, 0
    %v56 = vsel %vm45, %v24, 0
    %v59 = vsel %vm45, %v25, 0
    %v62 = vsel %vm45, %v26, 0
    %v65 = vsel %vm45, %v27, 0
    %v68 = vsel %vm45, %v28, 0
    %v71 = vsel %vm45, %v29, 0
    %v74 = vsel %vm45, %v30, 0
    %v77 = vsel %vm45, %v31, 0
    %v80 = vsel %vm45, %v32, 0
    %v83 = vsel %vm45, %v33, 0
    %v86 = vsel %vm45, %v34, 0
    %v89 = vsel %vm45, %v35, 0
    %v92 = vsel %vm45, %v36, 0
    %v95 = vsel %vm45, %v37, 0
    %97 = vmatprep.subr.mxu0 0.0
    %98 = vmatpush1.xpose.msra.mxu0 %v50
    %99 = vmatprep.subr.mxu0 0.0
    %100 = vmatpush1.xpose.msra.mxu0 %v53
    %101 = vmatprep.subr.mxu0 0.0
    %102 = vmatpush1.xpose.msra.mxu0 %v56
    %103 = vmatprep.subr.mxu0 0.0
    %104 = vmatpush1.xpose.msra.mxu0 %v59
    %105 = vmatprep.subr.mxu0 0.0
    %106 = vmatpush1.xpose.msra.mxu0 %v62
    %107 = vmatprep.subr.mxu0 0.0
    %108 = vmatpush1.xpose.msra.mxu0 %v65
    %109 = vmatprep.subr.mxu0 0.0
    %110 = vmatpush1.xpose.msra.mxu0 %v68
    %111 = vmatprep.subr.mxu0 0.0
    %112 = vmatpush1.xpose.msra.mxu0 %v71
    %113 = vmatprep.subr.mxu0 0.0
    %114 = vmatpush1.xpose.msra.mxu0 %v74
    %115 = vmatprep.subr.mxu0 0.0
    %116 = vmatpush1.xpose.msra.mxu0 %v77
    %117 = vmatprep.subr.mxu0 0.0
    %118 = vmatpush1.xpose.msra.mxu0 %v80
    %119 = vmatprep.subr.mxu0 0.0
    %120 = vmatpush1.xpose.msra.mxu0 %v83
    %121 = vmatprep.subr.mxu0 0.0
    %122 = vmatpush1.xpose.msra.mxu0 %v86
    %123 = vmatprep.subr.mxu0 0.0
    %124 = vmatpush1.xpose.msra.mxu0 %v89
    %125 = vmatprep.subr.mxu0 0.0
    %126 = vmatpush1.xpose.msra.mxu0 %v92
    %127 = vmatprep.subr.mxu0 0.0
    %128 = vmatpush1.xpose.msra.mxu0 %v95
    %129 = vmatprep.subr.mxu0 0.0
    %130 = vmatpush1.xpose.msra.mxu0 0.0
    %131 = vmatprep.subr.mxu0 0.0
    %132 = vmatpush1.xpose.msra.mxu0 0.0
    %133 = vmatprep.subr.mxu0 0.0
    %134 = vmatpush1.xpose.msra.mxu0 0.0
    %135 = vmatprep.subr.mxu0 0.0
    %136 = vmatpush1.xpose.msra.mxu0 0.0
    %137 = vmatprep.subr.mxu0 0.0
    %138 = vmatpush1.xpose.msra.mxu0 0.0
    %139 = vmatprep.subr.mxu0 0.0
    %140 = vmatpush1.xpose.msra.mxu0 0.0
    %141 = vmatprep.subr.mxu0 0.0
    %142 = vmatpush1.xpose.msra.mxu0 0.0
    %143 = vmatprep.subr.mxu0 0.0
    %144 = vmatpush1.xpose.msra.mxu0 0.0
    %145 = vmatprep.subr.mxu0 0.0
    %146 = vmatpush1.xpose.msra.mxu0 0.0
    %147 = vmatprep.subr.mxu0 0.0
    %148 = vmatpush1.xpose.msra.mxu0 0.0
    %149 = vmatprep.subr.mxu0 0.0
    %150 = vmatpush1.xpose.msra.mxu0 0.0
    %151 = vmatprep.subr.mxu0 0.0
    %152 = vmatpush1.xpose.msra.mxu0 0.0
    %153 = vmatprep.subr.mxu0 0.0
    %154 = vmatpush1.xpose.msra.mxu0 0.0
    %155 = vmatprep.subr.mxu0 0.0
    %156 = vmatpush1.xpose.msra.mxu0 0.0
    %157 = vmatprep.subr.mxu0 0.0
    %158 = vmatpush1.xpose.msra.mxu0 0.0
    %159 = vmatprep.subr.mxu0 0.0
    %160 = vmatpush1.xpose.msra.mxu0 0.0
    %161 = vmatprep.mubr.f32.mxu0 0.0
    %162 = vmatmul.mubr.f32.gmra.mrb[0].mxu0 %v47
    %v163 = vpop.f32.mrb[0].mxu0
    %v164 = vadd.f32 %v43, %v163
    %v165 = vpop.f32.mrb[0].mxu0
    %166 = vdwg.mxu0
    %v167 = vxor.u32 %v164, 2147483648
    %v168 = vmul.f32 %v167, 1.442695
    %v169 = vpow.pop %v168
    %v170 = vadd.f32 %v169, 1.0
    %v171 = vrcp.pop %v170
    %v172 = vmul.f32 1.0, %v171
    %v173 = vld [vmem:[%s3] sm:$0xff]
    %v174 = vld [vmem:[%s3 + $0x8] sm:$0xff]
    %v175 = vld [vmem:[%s4] sm:$0x1]
    %v177 = vlaneseq
    %v178 = vshrl.u32 %v177, 7
    %v179 = vsub.s32 0, %v178
    %v180 = vrot.slane %v175, %v179
    %182 = vmatprep.subr.mxu0 0.0
    %183 = vmatpush1.xpose.msra.mxu0 %v173
    %184 = vmatprep.subr.mxu0 0.0
    %185 = vmatpush1.xpose.msra.mxu0 %v174
    %186 = vmatprep.subr.mxu0 0.0
    %187 = vmatpush1.xpose.msra.mxu0 0.0
    %188 = vmatprep.subr.mxu0 0.0
    %189 = vmatpush1.xpose.msra.mxu0 0.0
    %190 = vmatprep.subr.mxu0 0.0
    %191 = vmatpush1.xpose.msra.mxu0 0.0
    %192 = vmatprep.subr.mxu0 0.0
    %193 = vmatpush1.xpose.msra.mxu0 0.0
    %194 = vmatprep.subr.mxu0 0.0
    %195 = vmatpush1.xpose.msra.mxu0 0.0
    %196 = vmatprep.subr.mxu0 0.0
    %197 = vmatpush1.xpose.msra.mxu0 0.0
    %198 = vmatprep.subr.mxu0 0.0
    %199 = vmatpush1.xpose.msra.mxu0 0.0
    %200 = vmatprep.subr.mxu0 0.0
    %201 = vmatpush1.xpose.msra.mxu0 0.0
    %202 = vmatprep.subr.mxu0 0.0
    %203 = vmatpush1.xpose.msra.mxu0 0.0
    %204 = vmatprep.subr.mxu0 0.0
    %205 = vmatpush1.xpose.msra.mxu0 0.0
    %206 = vmatprep.subr.mxu0 0.0
    %207 = vmatpush1.xpose.msra.mxu0 0.0
    %208 = vmatprep.subr.mxu0 0.0
    %209 = vmatpush1.xpose.msra.mxu0 0.0
    %210 = vmatprep.subr.mxu0 0.0
    %211 = vmatpush1.xpose.msra.mxu0 0.0
    %212 = vmatprep.subr.mxu0 0.0
    %213 = vmatpush1.xpose.msra.mxu0 0.0
    %214 = vmatprep.subr.mxu0 0.0
    %215 = vmatpush1.xpose.msra.mxu0 0.0
    %216 = vmatprep.subr.mxu0 0.0
    %217 = vmatpush1.xpose.msra.mxu0 0.0
    %218 = vmatprep.subr.mxu0 0.0
    %219 = vmatpush1.xpose.msra.mxu0 0.0
    %220 = vmatprep.subr.mxu0 0.0
    %221 = vmatpush1.xpose.msra.mxu0 0.0
    %222 = vmatprep.subr.mxu0 0.0
    %223 = vmatpush1.xpose.msra.mxu0 0.0
    %224 = vmatprep.subr.mxu0 0.0
    %225 = vmatpush1.xpose.msra.mxu0 0.0
    %226 = vmatprep.subr.mxu0 0.0
    %227 = vmatpush1.xpose.msra.mxu0 0.0
    %228 = vmatprep.subr.mxu0 0.0
    %229 = vmatpush1.xpose.msra.mxu0 0.0
    %230 = vmatprep.subr.mxu0 0.0
    %231 = vmatpush1.xpose.msra.mxu0 0.0
    %232 = vmatprep.subr.mxu0 0.0
    %233 = vmatpush1.xpose.msra.mxu0 0.0
    %234 = vmatprep.subr.mxu0 0.0
    %235 = vmatpush1.xpose.msra.mxu0 0.0
    %236 = vmatprep.subr.mxu0 0.0
    %237 = vmatpush1.xpose.msra.mxu0 0.0
    %238 = vmatprep.subr.mxu0 0.0
    %239 = vmatpush1.xpose.msra.mxu0 0.0
    %240 = vmatprep.subr.mxu0 0.0
    %241 = vmatpush1.xpose.msra.mxu0 0.0
    %242 = vmatprep.subr.mxu0 0.0
    %243 = vmatpush1.xpose.msra.mxu0 0.0
    %244 = vmatprep.subr.mxu0 0.0
    %245 = vmatpush1.xpose.msra.mxu0 0.0
    %246 = vmatprep.mubr.f32.mxu0 0.0
    %247 = vmatmul.mubr.f32.gmra.mrb[0].mxu0 %v172
    %v248 = vpop.f32.mrb[0].mxu0
    %v249 = vadd.f32 %v180, %v248
    %v250 = vpop.f32.mrb[0].mxu0
    %251 = vdwg.mxu0
    %vm252 = vcmask 130048
    %253 = vst.msk [vmem:[#allocation2] sm:$0xff] %vm252, %v249
    // Predicated region
    $region22: #{tpu_custom_call.1} parent=1 // pred_check
      _
    $region23: #{tpu_custom_call.1} parent=1 // pred_check_branch
      %255 = sbr.rel (0) target = $region25
    $region24: #{tpu_custom_call.1} parent=1 // pred_region
      %s257 = ssub.s32 128, 128
      %258 = vsyncadd [#allocation3], %s257
      %s260 = sshll.u32 [#allocation2], 4
      %s261 = int_to_ptr.vmem [resolvable:$true] %s260
      %263 = dma.vmem_to_hbm [thread:$0]  %s261, 128, %s5, [#allocation3]
    $region25: #{tpu_custom_call.1} parent=1 // pred_fallthru
      _
    // Predicated region
    $region26: #{tpu_custom_call.1} parent=1 // pred_check
      _
    $region27: #{tpu_custom_call.1} parent=1 // pred_check_branch
      %265 = sbr.rel (0) target = $region29
    $region28: #{tpu_custom_call.1} parent=1 // pred_region
      %266 = dma.done [#allocation3], 128
    $region29: #{tpu_custom_call.1} parent=1 // pred_fallthru
      _
    %267 = vsyncpa [#allocation3], 1

</llo_original>
